<compile_context>
chip_gen: v6e
topology: v6e:2x2x1
jax: 0.10.0
libtpu: 0.0.40
codegen_flags: <defaults>
</compile_context>

<pallas_src>
import jax
import jax.numpy as jnp
from jax.experimental import pallas as pl
from jax.experimental.pallas import tpu as pltpu


def _bcast_kernel(w_ref, o_ref):
    # w_ref: (1, TF)  slice of the flattened embedding table (VMEM)
    # o_ref: (TB, TF) lane-dense output tile covering TB batch rows (VMEM)
    # Single sublane broadcast per grid step; straight vld -> vst stream.
    o_ref[...] = jnp.broadcast_to(w_ref[...], o_ref.shape)


def _physical_vmem_bytes():
    """Per-core physical VMEM; conservative fallback = 64 MiB (v7x)."""
    try:
        info = pltpu.get_tpu_info()
        v = getattr(info, "vmem_capacity_bytes", None)
        if v:
            return int(v)
    except Exception:
        pass
    return 64 << 20


def _choose_tiles(batch, feat, elem_bytes, target_block_bytes, max_tf=16 * 1024):
    """Pick (TB, TF) so each output block is ~target_block_bytes and (8,128)-legal."""
    # Feature (lane) tile: multiple of 128 lanes, or the full extent.
    if feat % 128 == 0:
        tf = min(feat, max_tf)
    else:
        # Full extent is the only legal lane tile for a non-128-multiple; the
        # wrapper guards against this blowing the VMEM budget.
        tf = feat
    # Batch (sublane) tile: multiple of 8, or the full batch extent.
    rows = max(1, target_block_bytes // (tf * elem_bytes))
    if rows >= batch:
        tb = batch
    else:
        tb = min(batch, max(8, (rows // 8) * 8))
    return tb, tf


def positional_embedding_forward(tokens, weight, *, min_pallas_bytes=1 << 20):
    """tokens: [B, seq] int array (only the batch size matters).
    weight: [max_len, hidden] float embedding table.
    returns: [B, max_len, hidden] (weight repeated over the batch)."""
    batch = tokens.shape[0]
    max_len, hidden = weight.shape
    feat = max_len * hidden
    elem = jnp.dtype(weight.dtype).itemsize
    out_bytes = batch * feat * elem

    # Fast path: for tiny outputs the kernel launch / DMA setup dwarfs the copy.
    if out_bytes < min_pallas_bytes:
        return jnp.broadcast_to(weight[None, :, :], (batch, max_len, hidden))

    # Generation-aware VMEM budget: raises v5e's 16 MiB scoped default, stays
    # well inside v7x's 64 MiB physical VMEM.
    phys_vmem = _physical_vmem_bytes()
    vmem_limit = min(phys_vmem // 2, 64 << 20)        # 32 MiB (v7x) / 64 MiB (v5e/v6e)
    target_block = min(8 << 20, vmem_limit // 4)      # ~8 MiB output blocks

    tb, tf = _choose_tiles(batch, feat, elem, target_block)

    # Guard: double-buffered output blocks + input slices must fit the budget
    # (can fail only for huge feature extents that are not multiples of 128).
    if 2 * (tb * tf + tf) * elem > vmem_limit - (1 << 20):
        return jnp.broadcast_to(weight[None, :, :], (batch, max_len, hidden))

    # Lane-dense view of the table: (1, max_len*hidden) -> unmasked full-vreg vst.
    w_flat = weight.reshape(1, feat)
    feat_tiles = pl.cdiv(feat, tf)
    batch_tiles = pl.cdiv(batch, tb)

    if feat_tiles > 1:
        # Batch innermost: weight block index (0, f) is constant across the
        # inner loop -> Pallas skips the redundant weight re-DMA per batch tile.
        # Leading (megacore-sharded) axis has extent feat_tiles >= 2.
        grid = (feat_tiles, batch_tiles)
        w_map = lambda f, b: (0, f)
        o_map = lambda f, b: (b, f)
    else:
        # Single feature tile: weight block index is always (0, 0) (never
        # re-fetched), so put batch leading to give v7x a shardable axis.
        grid = (batch_tiles, feat_tiles)
        w_map = lambda b, f: (0, f)
        o_map = lambda b, f: (b, f)

    out_flat = pl.pallas_call(
        _bcast_kernel,
        out_shape=jax.ShapeDtypeStruct((batch, feat), weight.dtype),
        grid_spec=pltpu.PrefetchScalarGridSpec(
            num_scalar_prefetch=0,
            grid=grid,
            in_specs=[pl.BlockSpec((1, tf), w_map)],
            out_specs=pl.BlockSpec((tb, tf), o_map),
        ),
        compiler_params=pltpu.CompilerParams(
            # Pure broadcast: both axes independent -> megacore-shardable.
            dimension_semantics=("parallel", "parallel"),
            vmem_limit_bytes=vmem_limit,
        ),
        cost_estimate=pl.CostEstimate(
            flops=0,
            transcendentals=0,
            bytes_accessed=out_bytes + feat * elem,
        ),
    )(w_flat)

    # Row-major reshape back to the PyTorch output layout (layout plumbing only).
    return out_flat.reshape(batch, max_len, hidden)


if __name__ == "__main__":
    key = jax.random.PRNGKey(0)
    k_w, k_t = jax.random.split(key)

    # Small config consistent with the module: max_len=8, hidden_units=32.
    batch, seq, max_len, hidden = 2, 8, 8, 32

    # nn.Embedding default init: weight ~ N(0, 1)
    weight = jax.random.normal(k_w, (max_len, hidden), dtype=jnp.float32)
    tokens = jax.random.randint(k_t, (batch, seq), 0, max_len, dtype=jnp.int32)
    ref = jnp.broadcast_to(weight[None, :, :], (batch, max_len, hidden))

    # 1) Force the Pallas path at the small shape (exercise the kernel).
    out = jax.block_until_ready(
        positional_embedding_forward(tokens, weight, min_pallas_bytes=0))
    assert out.shape == (batch, max_len, hidden)
    assert out.dtype == jnp.float32
    assert jnp.array_equal(out, ref)        # pure copy -> bit-exact

    # 2) Default dispatch: tiny output takes the jnp.broadcast_to fast path.
    out_fast = jax.block_until_ready(positional_embedding_forward(tokens, weight))
    assert jnp.array_equal(out_fast, ref)

    # 3) Larger config exercising the multi-feature-tile Pallas path
    #    (feat = 65536 -> 4 feature tiles, batch innermost, weight not re-DMA'd).
    k_w2, k_t2 = jax.random.split(k_w)
    b2, l2, h2 = 16, 64, 1024
    w2 = jax.random.normal(k_w2, (l2, h2), dtype=jnp.float32)
    t2 = jax.random.randint(k_t2, (b2, 7), 0, l2, dtype=jnp.int32)
    out2 = jax.block_until_ready(positional_embedding_forward(t2, w2))
    assert jnp.array_equal(out2, jnp.broadcast_to(w2[None], (b2, l2, h2)))

    print("KERNEL_OK")
</pallas_src>

<mosaic_0001>
module attributes {stable_mosaic.version = 11 : i64} {
  func.func @_bcast_kernel(%arg0: i32, %arg1: i32, %arg2: memref<1x256xf32, #tpu.memory_space<vmem>>, %arg3: memref<2x256xf32, #tpu.memory_space<vmem>>) attributes {dimension_semantics = [#tpu.dimension_semantics<parallel>, #tpu.dimension_semantics<parallel>], iteration_bounds = array<i64: 1, 1>, scalar_prefetch = 0 : i64, scratch_operands = 0 : i64, tpu.core_type = #tpu.core_type<tc>, window_params = [{transform_indices = @transform_0, window_bounds = array<i64: 1, 256>}, {transform_indices = @transform_1, window_bounds = array<i64: 2, 256>}]} {
    %c0 = arith.constant 0 : index
    %c0_0 = arith.constant 0 : index
    %0 = vector.load %arg2[%c0, %c0_0] : memref<1x256xf32, #tpu.memory_space<vmem>>, vector<1x256xf32>
    %1 = vector.shape_cast %0 : vector<1x256xf32> to vector<1x256xf32>
    %2 = vector.broadcast %1 : vector<1x256xf32> to vector<2x256xf32>
    %c0_1 = arith.constant 0 : index
    %c0_2 = arith.constant 0 : index
    %3 = vector.load %arg3[%c0_1, %c0_2] : memref<2x256xf32, #tpu.memory_space<vmem>>, vector<2x256xf32>
    tpu.vector_store %arg3[%c0_1, %c0_2], %2 {strides = array<i32>} : memref<2x256xf32, #tpu.memory_space<vmem>>, vector<2x256xf32>,
    return
  }
  func.func @transform_0(%arg0: i32, %arg1: i32) -> (i32, i32) {
    %c0_i32 = arith.constant 0 : i32
    %c0_i32_0 = arith.constant 0 : i32
    return %c0_i32, %arg1 : i32, i32
  }
  func.func @transform_1(%arg0: i32, %arg1: i32) -> (i32, i32) {
    %c0_i32 = arith.constant 0 : i32
    return %arg0, %arg1 : i32, i32
  }
}

</mosaic_0001>

<llo_original>
// kernel: tpu_custom_call.1
$region0: #{tpu_custom_call.1}
  #allocation0 [shape = 'u32[]', space=smem, size = 0x4, offset = 0x4, fixed_abs, tag = 'smem constant byte address 0x4 - core index']
  #allocation1 [shape = 'u32[144,128]{1,0:T(1,128)}', space=vmem, size = 0x12000, scoped, tag = 'internal scratch']
  %s0 = inlined_call_operand.hbm [shape: f32[1,256], index: 0, kind: input, shape index: {}]
  %s1 = inlined_call_operand.hbm [shape: f32[2,256], index: 1, kind: output, shape index: {}]
  %s2 = sld [smem:[#allocation0]]
  $region18: #{tpu_custom_call.1} parent=0
    _
  %s4 = ssub.s32 1, %s2
  %s5 = scalar_select 0, %s4, %s2
  $region1: #{tpu_custom_call.1} parent=0
    #allocation2 [shape = 'u8[1024]{0}', space=vmem, size = 0x400, scoped, tag = 'input window, operand 0, single buffered']
    #allocation3 [shape = 's32[1]{0}', space=sflag, size = 0x4, scoped, tag = 'scoped memory for tpu_custom_call.1']
    #allocation4 [shape = 's32[1]{0}', space=sflag, size = 0x4, scoped, tag = 'scoped memory for tpu_custom_call.1']
    #allocation5 [shape = 'u8[2048]{0}', space=vmem, size = 0x800, scoped, tag = 'output window, operand 0, single buffered']
    %6 = vsyncpa [#allocation3], 0
    %7 = vsyncpa [#allocation4], 0
    // Predicated region
    $region2: #{tpu_custom_call.1} parent=1 // pred_check
      _
    $region3: #{tpu_custom_call.1} parent=1 // pred_check_branch
      %9 = sbr.rel (0) target = $region5
    $region4: #{tpu_custom_call.1} parent=1 // pred_region
      %s11 = ssub.s32 32, 32
      %12 = vsyncadd [#allocation3], %s11
      %s14 = sshll.u32 [#allocation2], 4
      %s15 = int_to_ptr.vmem [resolvable:$true] %s14
      %17 = dma.hbm_to_vmem [thread:$0]  %s0, 32, %s15, [#allocation3]
    $region5: #{tpu_custom_call.1} parent=1 // pred_fallthru
      _
    // Predicated region
    $region6: #{tpu_custom_call.1} parent=1 // pred_check
      _
    $region7: #{tpu_custom_call.1} parent=1 // pred_check_branch
      %19 = sbr.rel (0) target = $region9
    $region8: #{tpu_custom_call.1} parent=1 // pred_region
      %20 = dma.done [#allocation3], 32
    $region9: #{tpu_custom_call.1} parent=1 // pred_fallthru
      _
    %v21 = vld [vmem:[#allocation2] sm:$0x3]
    %v23 = vlaneseq
    %v24 = vshrl.u32 %v23, 7
    %v25 = vsub.s32 0, %v24
    %v26 = vrot.slane %v21, %v25
    %v27 = vlaneseq
    %v28 = vshrl.u32 %v27, 7
    %v29 = vsub.s32 1, %v28
    %v30 = vrot.slane %v21, %v29
    %v31 = vcombine.low %v26, %v30
    %v33 = vunpack.c.l.s4 1983009808
    %v34 = vunpack.c.0.s8 %v33
    %v35 = vlaneseq
    %v36 = vshrl.u32 %v35, 7
    %v37 = vsub.s32 %v34, %v36
    %v38 = vrot.slane %v31, %v37
    %40 = vst [vmem:[#allocation5] sm:$0xf] %v38
    // Predicated region
    $region10: #{tpu_custom_call.1} parent=1 // pred_check
      _
    $region11: #{tpu_custom_call.1} parent=1 // pred_check_branch
      %42 = sbr.rel (0) target = $region13
    $region12: #{tpu_custom_call.1} parent=1 // pred_region
      %s44 = ssub.s32 64, 64
      %45 = vsyncadd [#allocation4], %s44
      %s47 = sshll.u32 [#allocation5], 4
      %s48 = int_to_ptr.vmem [resolvable:$true] %s47
      %50 = dma.vmem_to_hbm [thread:$0]  %s48, 64, %s1, [#allocation4]
    $region13: #{tpu_custom_call.1} parent=1 // pred_fallthru
      _
    // Predicated region
    $region14: #{tpu_custom_call.1} parent=1 // pred_check
      _
    $region15: #{tpu_custom_call.1} parent=1 // pred_check_branch
      %52 = sbr.rel (0) target = $region17
    $region16: #{tpu_custom_call.1} parent=1 // pred_region
      %53 = dma.done [#allocation4], 64
    $region17: #{tpu_custom_call.1} parent=1 // pred_fallthru
      _
    %54 = vsyncpa [#allocation3], 1
    %55 = vsyncpa [#allocation4], 1

</llo_original>
